<compile_context>
chip_gen: v5e
topology: v5e:2x2
jax: 0.10.0
libtpu: 0.0.40
codegen_flags: <defaults>
</compile_context>

<pallas_src>
import math
from functools import partial

import jax
import jax.numpy as jnp
from jax import lax
from jax.experimental import pallas as pl
from jax.experimental.pallas import tpu as pltpu

# ---------------- model hyper-params (small, consistent with the module) ----------------
BATCH = 2
SEQ = 8
HIDDEN = 32
NUM_HEADS = 4
HEAD_DIM = HIDDEN // NUM_HEADS
FFN = 4 * HIDDEN
LN_EPS = 1e-5


def _layernorm(v, gamma, beta):
    # PyTorch LayerNorm: biased variance over the last dim (kept in f32 on the VPU)
    mu = jnp.mean(v, axis=-1, keepdims=True)
    var = jnp.mean((v - mu) ** 2, axis=-1, keepdims=True)
    return (v - mu) * lax.rsqrt(var + LN_EPS) * gamma + beta


def _shift_div(idx, d: int):
    """Integer divide of an index array by a STATIC d; power-of-two -> shift."""
    if d & (d - 1) == 0:
        return idx >> (d.bit_length() - 1)
    return idx // d


def gpt2_block_kernel(
    x_ref,                       # (N, H) f32, N = B*S (batch folded)
    ln1_g_ref, ln1_b_ref,        # (1, H) f32
    wqkv_ref, bqkv_ref,          # (H, 3H) bf16 (softmax scale folded into Q cols), (1, 3H) f32
    wo_ref, bo_ref,              # (H, H) bf16, (1, H) f32
    ln2_g_ref, ln2_b_ref,        # (1, H) f32
    w1_ref, b1_ref,              # (H, 4H) bf16, (1, 4H) f32
    w2_ref, b2_ref,              # (4H, H) bf16, (1, H) f32
    o_ref,                       # (N, H) f32 — written directly, no repack
    *, seq, num_heads,
):
    x = x_ref[...].astype(jnp.float32)           # (N, H)
    N, H = x.shape
    hd = H // num_heads
    hn = num_heads * N

    # ---- ln1 ----
    y = _layernorm(x, ln1_g_ref[...], ln1_b_ref[...])

    # ---- fused QKV projection: bf16 operands on the MXU, f32 accumulation ----
    qkv = jnp.dot(y.astype(jnp.bfloat16), wqkv_ref[...],
                  preferred_element_type=jnp.float32) + bqkv_ref[...]
    q = qkv[:, 0 * H:1 * H]                      # softmax scale already folded into weights
    k = qkv[:, 1 * H:2 * H]
    v = qkv[:, 2 * H:3 * H]

    # ---- attention: all heads in two MXU passes, no 3-D head reshapes ----
    # Block-diagonal Q packing: row r = h*N + q_row keeps only head h's columns.
    r_i = lax.broadcasted_iota(jnp.int32, (hn, H), 0)
    c_i = lax.broadcasted_iota(jnp.int32, (hn, H), 1)
    head_sel = _shift_div(r_i, N) == _shift_div(c_i, hd)          # (hn, H) bool
    q_rep = jnp.concatenate([q] * num_heads, axis=0)              # sublane tile -> (hn, H)
    q_packed = jnp.where(head_sel, q_rep, 0.0).astype(jnp.bfloat16)

    # scores[h*N + q_row, j] = <q_head_h(q_row), k_head_h(j)>  -> (hn, N)
    scores = lax.dot_general(
        q_packed, k.astype(jnp.bfloat16),
        dimension_numbers=(((1,), (1,)), ((), ())),               # contract last dims (no k.T)
        preferred_element_type=jnp.float32)

    # block-diagonal (folded batch) causal mask — one 2-D where on (hn, N)
    rr = lax.broadcasted_iota(jnp.int32, (hn, N), 0)
    cc = lax.broadcasted_iota(jnp.int32, (hn, N), 1)
    qf = (rr & (N - 1)) if (N & (N - 1)) == 0 else (rr % N)       # folded query index
    same_seq = _shift_div(qf, seq) == _shift_div(cc, seq)
    mask = same_seq & (qf >= cc)
    scores = jnp.where(mask, scores, -1e30)

    # numerically-stable row softmax; exact reciprocal for the denominator
    m = jnp.max(scores, axis=-1, keepdims=True)
    p = jnp.exp(scores - m)
    p = p * pl.reciprocal(jnp.sum(p, axis=-1, keepdims=True))     # approx=False (default)

    # P @ V in one MXU pass, then fold the per-head row blocks back to (N, H)
    a_full = jnp.dot(p.astype(jnp.bfloat16), v.astype(jnp.bfloat16),
                     preferred_element_type=jnp.float32)          # (hn, H)
    a_sel = jnp.where(head_sel, a_full, 0.0)
    attn = a_sel[0:N]
    for h in range(1, num_heads):                                  # static, 3 VPU adds
        attn = attn + a_sel[h * N:(h + 1) * N]                     # (N, H)

    attn = jnp.dot(attn.astype(jnp.bfloat16), wo_ref[...],
                   preferred_element_type=jnp.float32) + bo_ref[...]
    # attention / residual dropout: identity in eval mode

    x = x + attn                                                   # residual 1

    # ---- MLP: ln2 -> linear1 -> GELU(exact erf, matches nn.GELU()) -> linear2 ----
    z = _layernorm(x, ln2_g_ref[...], ln2_b_ref[...])
    h1 = jnp.dot(z.astype(jnp.bfloat16), w1_ref[...],
                 preferred_element_type=jnp.float32) + b1_ref[...]
    h1 = 0.5 * h1 * (1.0 + lax.erf(h1 * (1.0 / math.sqrt(2.0))))
    mlp = jnp.dot(h1.astype(jnp.bfloat16), w2_ref[...],
                  preferred_element_type=jnp.float32) + b2_ref[...]
    # MLP dropout: identity in eval mode

    o_ref[...] = (x + mlp).astype(o_ref.dtype)                     # residual 2, (N, H)


def prepare_params(params):
    """One-time (load-time) parameter prep:
      * fold the 1/sqrt(head_dim) softmax scale into the Q columns of wqkv / bqkv,
      * cast the matmul weight matrices to bf16 for the MXU,
      * keep LN params and biases in f32 (they feed VPU adds)."""
    (ln1_g, ln1_b, wqkv, bqkv, wo, bo, ln2_g, ln2_b, w1, b1, w2, b2) = params
    scale = 1.0 / math.sqrt(HEAD_DIM)
    col = jnp.arange(3 * HIDDEN)
    col_scale = jnp.where(col < HIDDEN, scale, 1.0).astype(jnp.float32)
    wqkv = wqkv * col_scale[None, :]
    bqkv = bqkv * col_scale[None, :]
    return (ln1_g, ln1_b,
            wqkv.astype(jnp.bfloat16), bqkv,
            wo.astype(jnp.bfloat16), bo,
            ln2_g, ln2_b,
            w1.astype(jnp.bfloat16), b1,
            w2.astype(jnp.bfloat16), b2)


def gpt2_block(x, kparams):
    B, S, H = x.shape
    N = B * S
    x2 = x.reshape(N, H)                         # fold batch into the row dim
    args = (x2,) + tuple(kparams)

    # whole problem resident in VMEM, single kernel invocation (no grid) — fine at this size
    in_specs = [pl.BlockSpec(memory_space=pltpu.MemorySpace.VMEM) for _ in args]
    out_specs = pl.BlockSpec(memory_space=pltpu.MemorySpace.VMEM)

    flops = (
        2 * N * H * 3 * H                        # qkv projection
        + 2 * (NUM_HEADS * N) * H * N            # packed scores
        + 2 * (NUM_HEADS * N) * N * H            # p @ v
        + 2 * N * H * H                          # output projection
        + 2 * 2 * N * H * FFN                    # mlp linear1 + linear2
    )
    transcendentals = NUM_HEADS * N * N + N * FFN + 2 * N + NUM_HEADS * N
    bytes_accessed = int(
        x2.size * x2.dtype.itemsize
        + sum(int(p.size) * p.dtype.itemsize for p in kparams)
        + N * H * x.dtype.itemsize
    )

    out2 = pl.pallas_call(
        partial(gpt2_block_kernel, seq=S, num_heads=NUM_HEADS),
        out_shape=jax.ShapeDtypeStruct((N, H), x.dtype),
        in_specs=in_specs,
        out_specs=out_specs,
        cost_estimate=pl.CostEstimate(
            flops=flops,
            transcendentals=transcendentals,
            bytes_accessed=bytes_accessed,
        ),
    )(*args)
    return out2.reshape(B, S, H)                 # free reshape in XLA


def _reference(x, params):
    # pure-JAX f32 reference with PyTorch semantics (raw, unscaled params)
    (ln1_g, ln1_b, wqkv, bqkv, wo, bo, ln2_g, ln2_b, w1, b1, w2, b2) = params
    y = _layernorm(x, ln1_g, ln1_b)
    qkv = y @ wqkv + bqkv
    q, k, v = jnp.split(qkv, 3, axis=-1)
    B, S, H = x.shape
    q = q.reshape(B, S, NUM_HEADS, HEAD_DIM).transpose(0, 2, 1, 3)
    k = k.reshape(B, S, NUM_HEADS, HEAD_DIM).transpose(0, 2, 1, 3)
    v = v.reshape(B, S, NUM_HEADS, HEAD_DIM).transpose(0, 2, 1, 3)
    scores = jnp.einsum("bhqd,bhkd->bhqk", q, k) / math.sqrt(HEAD_DIM)
    mask = jnp.tril(jnp.ones((S, S), bool))
    scores = jnp.where(mask, scores, -1e30)
    p = jax.nn.softmax(scores, axis=-1)
    attn = jnp.einsum("bhqk,bhkd->bhqd", p, v).transpose(0, 2, 1, 3).reshape(B, S, H)
    attn = attn @ wo + bo
    x = x + attn
    z = _layernorm(x, ln2_g, ln2_b)
    hdd = z @ w1 + b1
    hdd = 0.5 * hdd * (1.0 + lax.erf(hdd / math.sqrt(2.0)))
    return x + hdd @ w2 + b2


def make_params(key):
    ks = jax.random.split(key, 8)
    std = 0.02
    ln1_g = jnp.ones((1, HIDDEN), jnp.float32)
    ln1_b = jnp.zeros((1, HIDDEN), jnp.float32)
    wqkv = jax.random.normal(ks[0], (HIDDEN, 3 * HIDDEN), jnp.float32) * std
    bqkv = jax.random.normal(ks[1], (1, 3 * HIDDEN), jnp.float32) * std
    wo = jax.random.normal(ks[2], (HIDDEN, HIDDEN), jnp.float32) * std
    bo = jax.random.normal(ks[3], (1, HIDDEN), jnp.float32) * std
    ln2_g = jnp.ones((1, HIDDEN), jnp.float32)
    ln2_b = jnp.zeros((1, HIDDEN), jnp.float32)
    w1 = jax.random.normal(ks[4], (HIDDEN, FFN), jnp.float32) * std
    b1 = jax.random.normal(ks[5], (1, FFN), jnp.float32) * std
    w2 = jax.random.normal(ks[6], (FFN, HIDDEN), jnp.float32) * std
    b2 = jax.random.normal(ks[7], (1, HIDDEN), jnp.float32) * std
    return (ln1_g, ln1_b, wqkv, bqkv, wo, bo, ln2_g, ln2_b, w1, b1, w2, b2)


if __name__ == "__main__":
    key = jax.random.PRNGKey(0)
    kx, kp = jax.random.split(key)
    x = jax.random.normal(kx, (BATCH, SEQ, HIDDEN), jnp.float32)
    params = make_params(kp)

    kparams = prepare_params(params)             # one-time: fold softmax scale, cast to bf16

    out = jax.block_until_ready(gpt2_block(x, kparams))
    ref = _reference(x, params)

    assert out.shape == (BATCH, SEQ, HIDDEN)
    # tolerance accounts for bf16 MXU operands vs the f32 PyTorch-semantics reference
    err = float(jnp.max(jnp.abs(out - ref)))
    assert err < 5e-2, f"max abs err {err}"

    print("KERNEL_OK")
</pallas_src>

<mosaic_0001>
module attributes {stable_mosaic.version = 11 : i64} {
  func.func @gpt2_block_kernel(%arg0: memref<16x32xf32, #tpu.memory_space<vmem>>, %arg1: memref<1x32xf32, #tpu.memory_space<vmem>>, %arg2: memref<1x32xf32, #tpu.memory_space<vmem>>, %arg3: memref<32x96xbf16, #tpu.memory_space<vmem>>, %arg4: memref<1x96xf32, #tpu.memory_space<vmem>>, %arg5: memref<32x32xbf16, #tpu.memory_space<vmem>>, %arg6: memref<1x32xf32, #tpu.memory_space<vmem>>, %arg7: memref<1x32xf32, #tpu.memory_space<vmem>>, %arg8: memref<1x32xf32, #tpu.memory_space<vmem>>, %arg9: memref<32x128xbf16, #tpu.memory_space<vmem>>, %arg10: memref<1x128xf32, #tpu.memory_space<vmem>>, %arg11: memref<128x32xbf16, #tpu.memory_space<vmem>>, %arg12: memref<1x32xf32, #tpu.memory_space<vmem>>, %arg13: memref<16x32xf32, #tpu.memory_space<vmem>>) attributes {dimension_semantics = [], scalar_prefetch = 0 : i64, scratch_operands = 0 : i64, tpu.core_type = #tpu.core_type<tc>} {
    %c0 = arith.constant 0 : index
    %c0_0 = arith.constant 0 : index
    %0 = vector.load %arg0[%c0, %c0_0] : memref<16x32xf32, #tpu.memory_space<vmem>>, vector<16x32xf32>
    %c0_1 = arith.constant 0 : index
    %c0_2 = arith.constant 0 : index
    %1 = vector.load %arg1[%c0_1, %c0_2] : memref<1x32xf32, #tpu.memory_space<vmem>>, vector<1x32xf32>
    %c0_3 = arith.constant 0 : index
    %c0_4 = arith.constant 0 : index
    %2 = vector.load %arg2[%c0_3, %c0_4] : memref<1x32xf32, #tpu.memory_space<vmem>>, vector<1x32xf32>
    %cst = arith.constant dense<0.000000e+00> : vector<16xf32>
    %3 = vector.multi_reduction <add>, %0, %cst [1] : vector<16x32xf32> to vector<16xf32>
    %4 = vector.shape_cast %3 : vector<16xf32> to vector<16x1xf32>
    %cst_5 = arith.constant 3.200000e+01 : f32
    %5 = vector.broadcast %cst_5 : f32 to vector<16x1xf32>
    %6 = arith.divf %4, %5 : vector<16x1xf32>
    %7 = vector.broadcast %6 : vector<16x1xf32> to vector<16x32xf32>
    %8 = arith.subf %0, %7 : vector<16x32xf32>
    %9 = arith.mulf %8, %8 : vector<16x32xf32>
    %cst_6 = arith.constant dense<0.000000e+00> : vector<16xf32>
    %10 = vector.multi_reduction <add>, %9, %cst_6 [1] : vector<16x32xf32> to vector<16xf32>
    %11 = vector.shape_cast %10 : vector<16xf32> to vector<16x1xf32>
    %cst_7 = arith.constant 3.200000e+01 : f32
    %12 = vector.broadcast %cst_7 : f32 to vector<16x1xf32>
    %13 = arith.divf %11, %12 : vector<16x1xf32>
    %14 = vector.broadcast %6 : vector<16x1xf32> to vector<16x32xf32>
    %15 = arith.subf %0, %14 : vector<16x32xf32>
    %cst_8 = arith.constant 9.99999974E-6 : f32
    %16 = vector.broadcast %cst_8 : f32 to vector<16x1xf32>
    %17 = arith.addf %13, %16 : vector<16x1xf32>
    %18 = math.rsqrt %17 : vector<16x1xf32>
    %19 = vector.broadcast %18 : vector<16x1xf32> to vector<16x32xf32>
    %20 = arith.mulf %15, %19 : vector<16x32xf32>
    %21 = vector.broadcast %1 : vector<1x32xf32> to vector<16x32xf32>
    %22 = arith.mulf %20, %21 : vector<16x32xf32>
    %23 = vector.broadcast %2 : vector<1x32xf32> to vector<16x32xf32>
    %24 = arith.addf %22, %23 : vector<16x32xf32>
    %25 = arith.truncf %24 : vector<16x32xf32> to vector<16x32xbf16>
    %c0_9 = arith.constant 0 : index
    %c0_10 = arith.constant 0 : index
    %26 = vector.load %arg3[%c0_9, %c0_10] : memref<32x96xbf16, #tpu.memory_space<vmem>>, vector<32x96xbf16>
    %cst_11 = arith.constant dense<0.000000e+00> : vector<16x96xf32>
    %27 = tpu.matmul %25, %26, %cst_11 {dimension_numbers = #tpu.dot_dimension_numbers<[1], [0], [0], [1], [0, 0, 1, 1], [], []>} : vector<16x32xbf16>, vector<32x96xbf16>, vector<16x96xf32> -> vector<16x96xf32>
    %c0_12 = arith.constant 0 : index
    %c0_13 = arith.constant 0 : index
    %28 = vector.load %arg4[%c0_12, %c0_13] : memref<1x96xf32, #tpu.memory_space<vmem>>, vector<1x96xf32>
    %29 = vector.broadcast %28 : vector<1x96xf32> to vector<16x96xf32>
    %30 = arith.addf %27, %29 : vector<16x96xf32>
    %31 = vector.extract_strided_slice %30 {offsets = [0, 0], sizes = [16, 32], strides = [1, 1]} : vector<16x96xf32> to vector<16x32xf32>
    %32 = vector.extract_strided_slice %30 {offsets = [0, 32], sizes = [16, 32], strides = [1, 1]} : vector<16x96xf32> to vector<16x32xf32>
    %33 = vector.extract_strided_slice %30 {offsets = [0, 64], sizes = [16, 32], strides = [1, 1]} : vector<16x96xf32> to vector<16x32xf32>
    %34 = tpu.iota {dimensions = array<i32: 0>} : vector<64x32xi32>
    %35 = tpu.iota {dimensions = array<i32: 1>} : vector<64x32xi32>
    %c4_i32 = arith.constant 4 : i32
    %36 = vector.broadcast %c4_i32 : i32 to vector<64x32xi32>
    %37 = arith.shrsi %34, %36 : vector<64x32xi32>
    %c3_i32 = arith.constant 3 : i32
    %38 = vector.broadcast %c3_i32 : i32 to vector<64x32xi32>
    %39 = arith.shrsi %35, %38 : vector<64x32xi32>
    %40 = arith.cmpi eq, %37, %39 : vector<64x32xi32>
    %41 = tpu.concatenate %31, %31, %31, %31 in 0 : vector<16x32xf32>, vector<16x32xf32>, vector<16x32xf32>, vector<16x32xf32> -> vector<64x32xf32>
    %cst_14 = arith.constant 0.000000e+00 : f32
    %42 = vector.broadcast %cst_14 : f32 to vector<64x32xf32>
    %43 = arith.select %40, %41, %42 : vector<64x32xi1>, vector<64x32xf32>
    %44 = arith.truncf %43 : vector<64x32xf32> to vector<64x32xbf16>
    %45 = arith.truncf %32 : vector<16x32xf32> to vector<16x32xbf16>
    %cst_15 = arith.constant dense<0.000000e+00> : vector<64x16xf32>
    %46 = tpu.matmul %44, %45, %cst_15 {dimension_numbers = #tpu.dot_dimension_numbers<[1], [1], [0], [0], [0, 0, 1, 0], [], []>} : vector<64x32xbf16>, vector<16x32xbf16>, vector<64x16xf32> -> vector<64x16xf32>
    %47 = tpu.iota {dimensions = array<i32: 0>} : vector<64x16xi32>
    %48 = tpu.iota {dimensions = array<i32: 1>} : vector<64x16xi32>
    %c15_i32 = arith.constant 15 : i32
    %49 = vector.broadcast %c15_i32 : i32 to vector<64x16xi32>
    %50 = arith.andi %47, %49 : vector<64x16xi32>
    %c3_i32_16 = arith.constant 3 : i32
    %51 = vector.broadcast %c3_i32_16 : i32 to vector<64x16xi32>
    %52 = arith.shrsi %50, %51 : vector<64x16xi32>
    %c3_i32_17 = arith.constant 3 : i32
    %53 = vector.broadcast %c3_i32_17 : i32 to vector<64x16xi32>
    %54 = arith.shrsi %48, %53 : vector<64x16xi32>
    %55 = arith.cmpi eq, %52, %54 : vector<64x16xi32>
    %56 = arith.cmpi sge, %50, %48 : vector<64x16xi32>
    %57 = arith.andi %55, %56 : vector<64x16xi1>
    %cst_18 = arith.constant -1.000000e+30 : f32
    %58 = vector.broadcast %cst_18 : f32 to vector<64x16xf32>
    %59 = arith.select %57, %46, %58 : vector<64x16xi1>, vector<64x16xf32>
    %cst_19 = arith.constant dense<0xFF800000> : vector<64xf32>
    %60 = vector.multi_reduction <maximumf>, %59, %cst_19 [1] : vector<64x16xf32> to vector<64xf32>
    %61 = vector.shape_cast %60 : vector<64xf32> to vector<64x1xf32>
    %62 = vector.broadcast %61 : vector<64x1xf32> to vector<64x16xf32>
    %63 = arith.subf %59, %62 : vector<64x16xf32>
    %64 = math.exp %63 : vector<64x16xf32>
    %cst_20 = arith.constant dense<0.000000e+00> : vector<64xf32>
    %65 = vector.multi_reduction <add>, %64, %cst_20 [1] : vector<64x16xf32> to vector<64xf32>
    %66 = vector.shape_cast %65 : vector<64xf32> to vector<64x1xf32>
    %67 = tpu.reciprocal %66 : vector<64x1xf32> -> vector<64x1xf32>
    %68 = vector.broadcast %67 : vector<64x1xf32> to vector<64x16xf32>
    %69 = arith.mulf %64, %68 : vector<64x16xf32>
    %70 = arith.truncf %69 : vector<64x16xf32> to vector<64x16xbf16>
    %71 = arith.truncf %33 : vector<16x32xf32> to vector<16x32xbf16>
    %cst_21 = arith.constant dense<0.000000e+00> : vector<64x32xf32>
    %72 = tpu.matmul %70, %71, %cst_21 {dimension_numbers = #tpu.dot_dimension_numbers<[1], [0], [0], [1], [0, 0, 1, 1], [], []>} : vector<64x16xbf16>, vector<16x32xbf16>, vector<64x32xf32> -> vector<64x32xf32>
    %cst_22 = arith.constant 0.000000e+00 : f32
    %73 = vector.broadcast %cst_22 : f32 to vector<64x32xf32>
    %74 = arith.select %40, %72, %73 : vector<64x32xi1>, vector<64x32xf32>
    %75 = vector.extract_strided_slice %74 {offsets = [0, 0], sizes = [16, 32], strides = [1, 1]} : vector<64x32xf32> to vector<16x32xf32>
    %76 = vector.extract_strided_slice %74 {offsets = [16, 0], sizes = [16, 32], strides = [1, 1]} : vector<64x32xf32> to vector<16x32xf32>
    %77 = arith.addf %75, %76 : vector<16x32xf32>
    %78 = vector.extract_strided_slice %74 {offsets = [32, 0], sizes = [16, 32], strides = [1, 1]} : vector<64x32xf32> to vector<16x32xf32>
    %79 = arith.addf %77, %78 : vector<16x32xf32>
    %80 = vector.extract_strided_slice %74 {offsets = [48, 0], sizes = [16, 32], strides = [1, 1]} : vector<64x32xf32> to vector<16x32xf32>
    %81 = arith.addf %79, %80 : vector<16x32xf32>
    %82 = arith.truncf %81 : vector<16x32xf32> to vector<16x32xbf16>
    %c0_23 = arith.constant 0 : index
    %c0_24 = arith.constant 0 : index
    %83 = vector.load %arg5[%c0_23, %c0_24] : memref<32x32xbf16, #tpu.memory_space<vmem>>, vector<32x32xbf16>
    %cst_25 = arith.constant dense<0.000000e+00> : vector<16x32xf32>
    %84 = tpu.matmul %82, %83, %cst_25 {dimension_numbers = #tpu.dot_dimension_numbers<[1], [0], [0], [1], [0, 0, 1, 1], [], []>} : vector<16x32xbf16>, vector<32x32xbf16>, vector<16x32xf32> -> vector<16x32xf32>
    %c0_26 = arith.constant 0 : index
    %c0_27 = arith.constant 0 : index
    %85 = vector.load %arg6[%c0_26, %c0_27] : memref<1x32xf32, #tpu.memory_space<vmem>>, vector<1x32xf32>
    %86 = vector.broadcast %85 : vector<1x32xf32> to vector<16x32xf32>
    %87 = arith.addf %84, %86 : vector<16x32xf32>
    %88 = arith.addf %0, %87 : vector<16x32xf32>
    %c0_28 = arith.constant 0 : index
    %c0_29 = arith.constant 0 : index
    %89 = vector.load %arg7[%c0_28, %c0_29] : memref<1x32xf32, #tpu.memory_space<vmem>>, vector<1x32xf32>
    %c0_30 = arith.constant 0 : index
    %c0_31 = arith.constant 0 : index
    %90 = vector.load %arg8[%c0_30, %c0_31] : memref<1x32xf32, #tpu.memory_space<vmem>>, vector<1x32xf32>
    %cst_32 = arith.constant dense<0.000000e+00> : vector<16xf32>
    %91 = vector.multi_reduction <add>, %88, %cst_32 [1] : vector<16x32xf32> to vector<16xf32>
    %92 = vector.shape_cast %91 : vector<16xf32> to vector<16x1xf32>
    %cst_33 = arith.constant 3.200000e+01 : f32
    %93 = vector.broadcast %cst_33 : f32 to vector<16x1xf32>
    %94 = arith.divf %92, %93 : vector<16x1xf32>
    %95 = vector.broadcast %94 : vector<16x1xf32> to vector<16x32xf32>
    %96 = arith.subf %88, %95 : vector<16x32xf32>
    %97 = arith.mulf %96, %96 : vector<16x32xf32>
    %cst_34 = arith.constant dense<0.000000e+00> : vector<16xf32>
    %98 = vector.multi_reduction <add>, %97, %cst_34 [1] : vector<16x32xf32> to vector<16xf32>
    %99 = vector.shape_cast %98 : vector<16xf32> to vector<16x1xf32>
    %cst_35 = arith.constant 3.200000e+01 : f32
    %100 = vector.broadcast %cst_35 : f32 to vector<16x1xf32>
    %101 = arith.divf %99, %100 : vector<16x1xf32>
    %102 = vector.broadcast %94 : vector<16x1xf32> to vector<16x32xf32>
    %103 = arith.subf %88, %102 : vector<16x32xf32>
    %cst_36 = arith.constant 9.99999974E-6 : f32
    %104 = vector.broadcast %cst_36 : f32 to vector<16x1xf32>
    %105 = arith.addf %101, %104 : vector<16x1xf32>
    %106 = math.rsqrt %105 : vector<16x1xf32>
    %107 = vector.broadcast %106 : vector<16x1xf32> to vector<16x32xf32>
    %108 = arith.mulf %103, %107 : vector<16x32xf32>
    %109 = vector.broadcast %89 : vector<1x32xf32> to vector<16x32xf32>
    %110 = arith.mulf %108, %109 : vector<16x32xf32>
    %111 = vector.broadcast %90 : vector<1x32xf32> to vector<16x32xf32>
    %112 = arith.addf %110, %111 : vector<16x32xf32>
    %113 = arith.truncf %112 : vector<16x32xf32> to vector<16x32xbf16>
    %c0_37 = arith.constant 0 : index
    %c0_38 = arith.constant 0 : index
    %114 = vector.load %arg9[%c0_37, %c0_38] : memref<32x128xbf16, #tpu.memory_space<vmem>>, vector<32x128xbf16>
    %cst_39 = arith.constant dense<0.000000e+00> : vector<16x128xf32>
    %115 = tpu.matmul %113, %114, %cst_39 {dimension_numbers = #tpu.dot_dimension_numbers<[1], [0], [0], [1], [0, 0, 1, 1], [], []>} : vector<16x32xbf16>, vector<32x128xbf16>, vector<16x128xf32> -> vector<16x128xf32>
    %c0_40 = arith.constant 0 : index
    %c0_41 = arith.constant 0 : index
    %116 = vector.load %arg10[%c0_40, %c0_41] : memref<1x128xf32, #tpu.memory_space<vmem>>, vector<1x128xf32>
    %117 = vector.broadcast %116 : vector<1x128xf32> to vector<16x128xf32>
    %118 = arith.addf %115, %117 : vector<16x128xf32>
    %cst_42 = arith.constant 5.000000e-01 : f32
    %119 = vector.broadcast %cst_42 : f32 to vector<16x128xf32>
    %120 = arith.mulf %119, %118 : vector<16x128xf32>
    %cst_43 = arith.constant 0.707106769 : f32
    %121 = vector.broadcast %cst_43 : f32 to vector<16x128xf32>
    %122 = arith.mulf %118, %121 : vector<16x128xf32>
    %123 = math.erf %122 : vector<16x128xf32>
    %cst_44 = arith.constant 1.000000e+00 : f32
    %124 = vector.broadcast %cst_44 : f32 to vector<16x128xf32>
    %125 = arith.addf %124, %123 : vector<16x128xf32>
    %126 = arith.mulf %120, %125 : vector<16x128xf32>
    %127 = arith.truncf %126 : vector<16x128xf32> to vector<16x128xbf16>
    %c0_45 = arith.constant 0 : index
    %c0_46 = arith.constant 0 : index
    %128 = vector.load %arg11[%c0_45, %c0_46] : memref<128x32xbf16, #tpu.memory_space<vmem>>, vector<128x32xbf16>
    %cst_47 = arith.constant dense<0.000000e+00> : vector<16x32xf32>
    %129 = tpu.matmul %127, %128, %cst_47 {dimension_numbers = #tpu.dot_dimension_numbers<[1], [0], [0], [1], [0, 0, 1, 1], [], []>} : vector<16x128xbf16>, vector<128x32xbf16>, vector<16x32xf32> -> vector<16x32xf32>
    %c0_48 = arith.constant 0 : index
    %c0_49 = arith.constant 0 : index
    %130 = vector.load %arg12[%c0_48, %c0_49] : memref<1x32xf32, #tpu.memory_space<vmem>>, vector<1x32xf32>
    %131 = vector.broadcast %130 : vector<1x32xf32> to vector<16x32xf32>
    %132 = arith.addf %129, %131 : vector<16x32xf32>
    %133 = arith.addf %88, %132 : vector<16x32xf32>
    %c0_50 = arith.constant 0 : index
    %c0_51 = arith.constant 0 : index
    %134 = vector.load %arg13[%c0_50, %c0_51] : memref<16x32xf32, #tpu.memory_space<vmem>>, vector<16x32xf32>
    tpu.vector_store %arg13[%c0_50, %c0_51], %133 {strides = array<i32>} : memref<16x32xf32, #tpu.memory_space<vmem>>, vector<16x32xf32>,
    return
  }
}

</mosaic_0001>

<llo_original>
// kernel: tpu_custom_call.1
$region0: #{tpu_custom_call.1}
  #allocation0 [shape = 'u32[]', space=smem, size = 0x4, offset = 0x4, fixed_abs, tag = 'smem constant byte address 0x4 - core index']
  #allocation1 [shape = 'u32[72,128]{1,0:T(1,128)}', space=vmem, size = 0x9000, scoped, tag = 'internal scratch']
  %s0 = inlined_call_operand.vmem [shape: f32[16,32], index: 0, kind: input, shape index: {}]
  %s1 = inlined_call_operand.vmem [shape: f32[1,32], index: 1, kind: input, shape index: {}]
  %s2 = inlined_call_operand.vmem [shape: f32[1,32], index: 2, kind: input, shape index: {}]
  %s3 = inlined_call_operand.vmem [shape: bf16[32,96], index: 3, kind: input, shape index: {}]
  %s4 = inlined_call_operand.vmem [shape: f32[1,96], index: 4, kind: input, shape index: {}]
  %s5 = inlined_call_operand.vmem [shape: bf16[32,32], index: 5, kind: input, shape index: {}]
  %s6 = inlined_call_operand.vmem [shape: f32[1,32], index: 6, kind: input, shape index: {}]
  %s7 = inlined_call_operand.vmem [shape: f32[1,32], index: 7, kind: input, shape index: {}]
  %s8 = inlined_call_operand.vmem [shape: f32[1,32], index: 8, kind: input, shape index: {}]
  %s9 = inlined_call_operand.vmem [shape: bf16[32,128], index: 9, kind: input, shape index: {}]
  %s10 = inlined_call_operand.vmem [shape: f32[1,128], index: 10, kind: input, shape index: {}]
  %s11 = inlined_call_operand.vmem [shape: bf16[128,32], index: 11, kind: input, shape index: {}]
  %s12 = inlined_call_operand.vmem [shape: f32[1,32], index: 12, kind: input, shape index: {}]
  %s13 = inlined_call_operand.hbm [shape: f32[16,32], index: 13, kind: output, shape index: {}]
  %s14 = sld [smem:[#allocation0]]
  $region62: #{tpu_custom_call.1} parent=0
    _
  %s16 = ssub.s32 1, %s14
  %s17 = scalar_select 0, %s16, %s14
  $region1: #{tpu_custom_call.1} parent=0
    #allocation2 [shape = 'u8[8192]{0}', space=vmem, size = 0x2000, scoped, tag = 'output window, operand 0, single buffered']
    #allocation3 [shape = 's32[1]{0}', space=sflag, size = 0x4, scoped, tag = 'scoped memory for tpu_custom_call.1']
    %18 = vsyncpa [#allocation3], 0
    // Predicated region
    $region2: #{tpu_custom_call.1} parent=1 // pred_check
      _
    $region3: #{tpu_custom_call.1} parent=1 // pred_check_branch
      %20 = sbr.rel (0) target = $region5
    $region4: #{tpu_custom_call.1} parent=1 // pred_region
      _
    $region5: #{tpu_custom_call.1} parent=1 // pred_fallthru
      _
    // Predicated region
    $region6: #{tpu_custom_call.1} parent=1 // pred_check
      _
    $region7: #{tpu_custom_call.1} parent=1 // pred_check_branch
      %22 = sbr.rel (0) target = $region9
    $region8: #{tpu_custom_call.1} parent=1 // pred_region
      _
    $region9: #{tpu_custom_call.1} parent=1 // pred_fallthru
      _
    // Predicated region
    $region10: #{tpu_custom_call.1} parent=1 // pred_check
      _
    $region11: #{tpu_custom_call.1} parent=1 // pred_check_branch
      %24 = sbr.rel (0) target = $region13
    $region12: #{tpu_custom_call.1} parent=1 // pred_region
      _
    $region13: #{tpu_custom_call.1} parent=1 // pred_fallthru
      _
    // Predicated region
    $region14: #{tpu_custom_call.1} parent=1 // pred_check
      _
    $region15: #{tpu_custom_call.1} parent=1 // pred_check_branch
      %26 = sbr.rel (0) target = $region17
    $region16: #{tpu_custom_call.1} parent=1 // pred_region
      _
    $region17: #{tpu_custom_call.1} parent=1 // pred_fallthru
      _
    // Predicated region
    $region18: #{tpu_custom_call.1} parent=1 // pred_check
      _
    $region19: #{tpu_custom_call.1} parent=1 // pred_check_branch
      %28 = sbr.rel (0) target = $region21
    $region20: #{tpu_custom_call.1} parent=1 // pred_region
      _
    $region21: #{tpu_custom_call.1} parent=1 // pred_fallthru
      _
    // Predicated region
    $region22: #{tpu_custom_call.1} parent=1 // pred_check
      _
    $region23: #{tpu_custom_call.1} parent=1 // pred_check_branch
      %30 = sbr.rel (0) target = $region25
    $region24: #{tpu_custom_call.1} parent=1 // pred_region
      _
    $region25: #{tpu_custom_call.1} parent=1 // pred_fallthru
      _
    // Predicated region
    $region26: #{tpu_custom_call.1} parent=1 // pred_check
      _
    $region27: #{tpu_custom_call.1} parent=1 // pred_check_branch
      %32 = sbr.rel (0) target = $region29
    $region28: #{tpu_custom_call.1} parent=1 // pred_region
      _
    $region29: #{tpu_custom_call.1} parent=1 // pred_fallthru
      _
    // Predicated region
    $region30: #{tpu_custom_call.1} parent=1 // pred_check
      _
    $region31: #{tpu_custom_call.1} parent=1 // pred_check_branch
      %34 = sbr.rel (0) target = $region33
    $region32: #{tpu_custom_call.1} parent=1 // pred_region
      _
    $region33: #{tpu_custom_call.1} parent=1 // pred_fallthru
      _
    // Predicated region
    $region34: #{tpu_custom_call.1} parent=1 // pred_check
      _
    $region35: #{tpu_custom_call.1} parent=1 // pred_check_branch
      %36 = sbr.rel (0) target = $region37
    $region36: #{tpu_custom_call.1} parent=1 // pred_region
      _
    $region37: #{tpu_custom_call.1} parent=1 // pred_fallthru
      _
    // Predicated region
    $region38: #{tpu_custom_call.1} parent=1 // pred_check
      _
    $region39: #{tpu_custom_call.1} parent=1 // pred_check_branch
      %38 = sbr.rel (0) target = $region41
    $region40: #{tpu_custom_call.1} parent=1 // pred_region
      _
    $region41: #{tpu_custom_call.1} parent=1 // pred_fallthru
      _
    // Predicated region
    $region42: #{tpu_custom_call.1} parent=1 // pred_check
      _
    $region43: #{tpu_custom_call.1} parent=1 // pred_check_branch
      %40 = sbr.rel (0) target = $region45
    $region44: #{tpu_custom_call.1} parent=1 // pred_region
      _
    $region45: #{tpu_custom_call.1} parent=1 // pred_fallthru
      _
    // Predicated region
    $region46: #{tpu_custom_call.1} parent=1 // pred_check
      _
    $region47: #{tpu_custom_call.1} parent=1 // pred_check_branch
      %42 = sbr.rel (0) target = $region49
    $region48: #{tpu_custom_call.1} parent=1 // pred_region
      _
    $region49: #{tpu_custom_call.1} parent=1 // pred_fallthru
      _
    // Predicated region
    $region50: #{tpu_custom_call.1} parent=1 // pred_check
      _
    $region51: #{tpu_custom_call.1} parent=1 // pred_check_branch
      %44 = sbr.rel (0) target = $region53
    $region52: #{tpu_custom_call.1} parent=1 // pred_region
      _
    $region53: #{tpu_custom_call.1} parent=1 // pred_fallthru
      _
    %v46 = vld [vmem:[%s0] sm:$0xff]
    %v47 = vld [vmem:[%s0 + $0x8] sm:$0xff]
    %v48 = vld [vmem:[%s1] sm:$0x1]
    %v49 = vld [vmem:[%s2] sm:$0x1]
    %vm50 = vcmask 261120
    %v51 = vsel %vm50, %v46, 0.0
    %52 = vadd.xlane.f32.xlu0 %v51
    %v53 = vpop.xlane.xlu0 %52
    %v54 = vsel %vm50, %v47, 0.0
    %55 = vadd.xlane.f32.xlu0 %v54
    %v56 = vpop.xlane.xlu0 %55
    %v57 = vrcp.pop 32.0
    %v58 = vmul.f32 32.0, %v57
    %v59 = vsub.f32 1.0, %v58
    %v60 = vmul.f32 %v57, %v59
    %v61 = vadd.f32 %v57, %v60
    %vm62 = vweird.f32 %v57
    %v63 = vsel %vm62, %v57, %v61
    %v64 = vmul.f32 %v53, %v63
    %v65 = vmul.f32 %v56, %v63
    %v66 = vsub.f32 %v46, %v64
    %v67 = vsub.f32 %v47, %v65
    %v68 = vmul.f32 %v66, %v66
    %v69 = vmul.f32 %v67, %v67
    %v70 = vsel %vm50, %v68, 0.0
    %71 = vadd.xlane.f32.xlu0 %v70
    %v72 = vpop.xlane.xlu0 %71
    %v73 = vsel %vm50, %v69, 0.0
    %74 = vadd.xlane.f32.xlu0 %v73
    %v75 = vpop.xlane.xlu0 %74
    %v76 = vmul.f32 %v72, %v63
    %v77 = vmul.f32 %v75, %v63
    %v78 = vadd.f32 %v76, 1e-05
    %v79 = vadd.f32 %v77, 1e-05
    %v80 = vrsqrt.pop %v78
    %v81 = vmul.f32 %v80, %v78
    %v82 = vmul.f32 %v81, %v80
    %v83 = vmul.f32 0.5, %v82
    %v84 = vsub.f32 1.5, %v83
    %v85 = vmul.f32 %v80, %v84
    %vm86 = vweird.f32 %v78
    %vm87 = vweird.f32 %v80
    %vm88 = vmor %vm86, %vm87
    %v89 = vsel %vm88, %v80, %v85
    %v90 = vrsqrt.pop %v79
    %v91 = vmul.f32 %v90, %v79
    %v92 = vmul.f32 %v91, %v90
    %v93 = vmul.f32 0.5, %v92
    %v94 = vsub.f32 1.5, %v93
    %v95 = vmul.f32 %v90, %v94
    %vm96 = vweird.f32 %v79
    %vm97 = vweird.f32 %v90
    %vm98 = vmor %vm96, %vm97
    %v99 = vsel %vm98, %v90, %v95
    %v100 = vmul.f32 %v66, %v89
    %v101 = vmul.f32 %v67, %v99
    %v103 = vperm.slane %v48, 0
    %v105 = vmul.f32 %v100, %v103
    %v106 = vmul.f32 %v101, %v103
    %v108 = vperm.slane %v49, 0
    %v110 = vadd.f32 %v105, %v108
    %v111 = vadd.f32 %v106, %v108
    %v112 = vpack.c.bf16 %v111, %v110
    %v113 = vld [vmem:[%s3] sm:$0xf]
    %v114 = vld [vmem:[%s3 + $0x4] sm:$0xf]
    %v115 = vld [vmem:[%s3 + $0x8] sm:$0xf]
    %v116 = vld [vmem:[%s3 + $0xc] sm:$0xf]
    %v117 = vld [vmem:[%s4] sm:$0x1]
    %v119 = vperm.slane %v117, 0
    %v125 = vunpack.c.l.b16 %v113
    %v126 = vunpack.c.l.b16 %v114
    %v127 = vunpack.c.l.b16 %v115
    %v128 = vunpack.c.l.b16 %v116
    %v129 = vpack.c.b16 %v126, %v125
    %v130 = vpack.c.b16 %v128, %v127
    %v134 = vsel %vm50, %v112, 0
    %136 = vmatpush.bf16.msra.mxu0 0
    %137 = vmatpush.bf16.msra.mxu0 0
    %138 = vmatpush.bf16.msra.mxu0 0
    %139 = vmatpush.bf16.msra.mxu0 0
    %140 = vmatpush.bf16.msra.mxu0 0
    %141 = vmatpush.bf16.msra.mxu0 0
    %142 = vmatpush.bf16.msra.mxu0 %v130
    %143 = vmatpush.bf16.msra.mxu0 %v129
    %144 = vmatmul.bf16.gmra.mxu0 %v134
    %v145 = vpop.f32.mrf.mxu0
    %v146 = vadd.f32 %v119, %v145
    %v147 = vpop.f32.mrf.mxu0
    %v148 = vadd.f32 %v119, %v147
    %149 = vdwg.mxu0
    %v150 = vlaneseq
    %v151 = vshrl.u32 %v150, 7
    %v152 = vadd.s32 %v151, 8
    %v153 = vadd.s32 %v151, 16
    %v154 = vadd.s32 %v151, 24
    %v155 = vadd.s32 %v151, 32
    %v156 = vadd.s32 %v151, 40
    %v157 = vadd.s32 %v151, 48
    %v158 = vadd.s32 %v151, 56
    %v159 = vlaneseq
    %v160 = vand.u32 %v159, 127
    %v161 = vshra.s32 %v151, 4
    %v162 = vshra.s32 %v152, 4
    %v163 = vshra.s32 %v153, 4
    %v164 = vshra.s32 %v154, 4
    %v165 = vshra.s32 %v155, 4
    %v166 = vshra.s32 %v156, 4
    %v167 = vshra.s32 %v157, 4
    %v168 = vshra.s32 %v158, 4
    %v169 = vshra.s32 %v160, 3
    %vm170 = vcmp.eq.s32.totalorder %v161, %v169
    %vm171 = vcmp.eq.s32.totalorder %v162, %v169
    %vm172 = vcmp.eq.s32.totalorder %v163, %v169
    %vm173 = vcmp.eq.s32.totalorder %v164, %v169
    %vm174 = vcmp.eq.s32.totalorder %v165, %v169
    %vm175 = vcmp.eq.s32.totalorder %v166, %v169
    %vm176 = vcmp.eq.s32.totalorder %v167, %v169
    %vm177 = vcmp.eq.s32.totalorder %v168, %v169
    %v178 = vsel %vm170, %v146, 0.0
    %v179 = vsel %vm171, %v148, 0.0
    %v180 = vsel %vm172, %v146, 0.0
    %v181 = vsel %vm173, %v148, 0.0
    %v182 = vsel %vm174, %v146, 0.0
    %v183 = vsel %vm175, %v148, 0.0
    %v184 = vsel %vm176, %v146, 0.0
    %v185 = vsel %vm177, %v148, 0.0
    %v186 = vpack.c.bf16 %v179, %v178
    %v187 = vpack.c.bf16 %v181, %v180
    %v188 = vpack.c.bf16 %v183, %v182
    %v189 = vpack.c.bf16 %v185, %v184
    %v190 = vpack.c.bf16 %v148, %v146
    %192 = vrot.lane.b32.xlu0 %v190, 96
    %v193 = vpop.permute.xlu0 %192
    %v195 = vsel %vm50, %v186, 0
    %v198 = vsel %vm50, %v187, 0
    %v201 = vsel %vm50, %v188, 0
    %v204 = vsel %vm50, %v189, 0
    %v207 = vsel %vm50, %v193, 0
    %209 = vmatpush.bf16.xpose.msra.mxu0 0
    %210 = vmatpush.bf16.xpose.msra.mxu0 0
    %211 = vmatpush.bf16.xpose.msra.mxu0 0
    %212 = vmatpush.bf16.xpose.msra.mxu0 0
    %213 = vmatpush.bf16.xpose.msra.mxu0 0
    %214 = vmatpush.bf16.xpose.msra.mxu0 0
    %215 = vmatpush.bf16.xpose.msra.mxu0 0
    %216 = vmatpush.bf16.xpose.msra.mxu0 %v207
    %217 = vmatmul.bf16.gmra.mxu0 %v195
    %v218 = vpop.f32.mrf.mxu0
    %v219 = vadd.f32 0.0, %v218
    %v220 = vpop.f32.mrf.mxu0
    %v221 = vadd.f32 0.0, %v220
    %222 = vmatmul.bf16.gmra.mxu0 %v198
    %v223 = vpop.f32.mrf.mxu0
    %v224 = vadd.f32 0.0, %v223
    %v225 = vpop.f32.mrf.mxu0
    %v226 = vadd.f32 0.0, %v225
    %227 = vmatmul.bf16.gmra.mxu0 %v201
    %v228 = vpop.f32.mrf.mxu0
    %v229 = vadd.f32 0.0, %v228
    %v230 = vpop.f32.mrf.mxu0
    %v231 = vadd.f32 0.0, %v230
    %232 = vmatmul.bf16.gmra.mxu0 %v204
    %v233 = vpop.f32.mrf.mxu0
    %v234 = vadd.f32 0.0, %v233
    %v235 = vpop.f32.mrf.mxu0
    %v236 = vadd.f32 0.0, %v235
    %237 = vdwg.mxu0
    %v238 = vand.u32 %v151, 15
    %v239 = vand.u32 %v152, 15
    %v240 = vand.u32 %v153, 15
    %v241 = vand.u32 %v154, 15
    %v242 = vand.u32 %v155, 15
    %v243 = vand.u32 %v156, 15
    %v244 = vand.u32 %v157, 15
    %v245 = vand.u32 %v158, 15
    %v246 = vshra.s32 %v238, 3
    %v247 = vshra.s32 %v239, 3
    %v248 = vshra.s32 %v240, 3
    %v249 = vshra.s32 %v241, 3
    %v250 = vshra.s32 %v242, 3
    %v251 = vshra.s32 %v243, 3
    %v252 = vshra.s32 %v244, 3
    %v253 = vshra.s32 %v245, 3
    %vm254 = vcmp.eq.s32.totalorder %v246, %v169
    %vm255 = vcmp.eq.s32.totalorder %v247, %v169
    %vm256 = vcmp.eq.s32.totalorder %v248, %v169
    %vm257 = vcmp.eq.s32.totalorder %v249, %v169
    %vm258 = vcmp.eq.s32.totalorder %v250, %v169
    %vm259 = vcmp.eq.s32.totalorder %v251, %v169
    %vm260 = vcmp.eq.s32.totalorder %v252, %v169
    %vm261 = vcmp.eq.s32.totalorder %v253, %v169
    %vm262 = vcmp.ge.s32.totalorder %v238, %v160
    %vm263 = vcmp.ge.s32.totalorder %v239, %v160
    %vm264 = vcmp.ge.s32.totalorder %v240, %v160
    %vm265 = vcmp.ge.s32.totalorder %v241, %v160
    %vm266 = vcmp.ge.s32.totalorder %v242, %v160
    %vm267 = vcmp.ge.s32.totalorder %v243, %v160
    %vm268 = vcmp.ge.s32.totalorder %v244, %v160
    %vm269 = vcmp.ge.s32.totalorder %v245, %v160
    %vm270 = vmand %vm254, %vm262
    %vm271 = vmand %vm255, %vm263
    %vm272 = vmand %vm256, %vm264
    %vm273 = vmand %vm257, %vm265
    %vm274 = vmand %vm258, %vm266
    %vm275 = vmand %vm259, %vm267
    %vm276 = vmand %vm260, %vm268
    %vm277 = vmand %vm261, %vm269
    %v278 = vsel %vm270, %v219, -1e+30
    %v279 = vsel %vm271, %v221, -1e+30
    %v280 = vsel %vm272, %v224, -1e+30
    %v281 = vsel %vm273, %v226, -1e+30
    %v282 = vsel %vm274, %v229, -1e+30
    %v283 = vsel %vm275, %v231, -1e+30
    %v284 = vsel %vm276, %v234, -1e+30
    %v285 = vsel %vm277, %v236, -1e+30
    %vm286 = vcmask 130048
    %v287 = vsel %vm286, %v278, -inf
    %288 = vmax.xlane.f32.xlu0 %v287
    %v289 = vpop.xlane.xlu0 %288
    %v290 = vsel %vm286, %v279, -inf
    %291 = vmax.xlane.f32.xlu0 %v290
    %v292 = vpop.xlane.xlu0 %291
    %v293 = vsel %vm286, %v280, -inf
    %294 = vmax.xlane.f32.xlu0 %v293
    %v295 = vpop.xlane.xlu0 %294
    %v296 = vsel %vm286, %v281, -inf
    %297 = vmax.xlane.f32.xlu0 %v296
    %v298 = vpop.xlane.xlu0 %297
    %v299 = vsel %vm286, %v282, -inf
    %300 = vmax.xlane.f32.xlu0 %v299
    %v301 = vpop.xlane.xlu0 %300
    %v302 = vsel %vm286, %v283, -inf
    %303 = vmax.xlane.f32.xlu0 %v302
    %v304 = vpop.xlane.xlu0 %303
    %v305 = vsel %vm286, %v284, -inf
    %306 = vmax.xlane.f32.xlu0 %v305
    %v307 = vpop.xlane.xlu0 %306
    %v308 = vsel %vm286, %v285, -inf
    %309 = vmax.xlane.f32.xlu0 %v308
    %v310 = vpop.xlane.xlu0 %309
    %v311 = vsub.f32 %v278, %v289
    %v312 = vsub.f32 %v279, %v292
    %v313 = vsub.f32 %v280, %v295
    %v314 = vsub.f32 %v281, %v298
    %v315 = vsub.f32 %v282, %v301
    %v316 = vsub.f32 %v283, %v304
    %v317 = vsub.f32 %v284, %v307
    %v318 = vsub.f32 %v285, %v310
    %v319 = vmul.f32 %v311, 1.442695
    %v320 = vpow.pop %v319
    %v321 = vmul.f32 %v312, 1.442695
    %v322 = vpow.pop %v321
    %v323 = vmul.f32 %v313, 1.442695
    %v324 = vpow.pop %v323
    %v325 = vmul.f32 %v314, 1.442695
    %v326 = vpow.pop %v325
    %v327 = vmul.f32 %v315, 1.442695
    %v328 = vpow.pop %v327
    %v329 = vmul.f32 %v316, 1.442695
    %v330 = vpow.pop %v329
    %v331 = vmul.f32 %v317, 1.442695
    %v332 = vpow.pop %v331
    %v333 = vmul.f32 %v318, 1.442695
    %v334 = vpow.pop %v333
    %v335 = vsel %vm286, %v320, 0.0
    %336 = vadd.xlane.f32.xlu0 %v335
    %v337 = vpop.xlane.xlu0 %336
    %v338 = vsel %vm286, %v322, 0.0
    %339 = vadd.xlane.f32.xlu0 %v338
    %v340 = vpop.xlane.xlu0 %339
    %v341 = vsel %vm286, %v324, 0.0
    %342 = vadd.xlane.f32.xlu0 %v341
    %v343 = vpop.xlane.xlu0 %342
    %v344 = vsel %vm286, %v326, 0.0
    %345 = vadd.xlane.f32.xlu0 %v344
    %v346 = vpop.xlane.xlu0 %345
    %v347 = vsel %vm286, %v328, 0.0
    %348 = vadd.xlane.f32.xlu0 %v347
    %v349 = vpop.xlane.xlu0 %348
    %v350 = vsel %vm286, %v330, 0.0
    %351 = vadd.xlane.f32.xlu0 %v350
    %v352 = vpop.xlane.xlu0 %351
    %v353 = vsel %vm286, %v332, 0.0
    %354 = vadd.xlane.f32.xlu0 %v353
    %v355 = vpop.xlane.xlu0 %354
    %v356 = vsel %vm286, %v334, 0.0
    %357 = vadd.xlane.f32.xlu0 %v356
    %v358 = vpop.xlane.xlu0 %357
    %v359 = vrcp.pop %v337
    %v360 = vmul.f32 %v337, %v359
    %v361 = vsub.f32 1.0, %v360
    %v362 = vmul.f32 %v359, %v361
    %v363 = vadd.f32 %v359, %v362
    %vm364 = vweird.f32 %v337
    %vm365 = vweird.f32 %v359
    %vm366 = vmor %vm364, %vm365
    %v367 = vsel %vm366, %v359, %v363
    %v368 = vand.u32 2147483647, %v337
    %vm369 = vcmp.eq.f32.partialorder %v368, 8.507059e+37
    %v370 = vand.u32 %v337, 2147483648
    %v371 = vor.u32 1.1754944e-38, %v370
    %v372 = vsel %vm369, %v371, %v367
    %v373 = vrcp.pop %v340
    %v374 = vmul.f32 %v340, %v373
    %v375 = vsub.f32 1.0, %v374
    %v376 = vmul.f32 %v373, %v375
    %v377 = vadd.f32 %v373, %v376
    %vm378 = vweird.f32 %v340
    %vm379 = vweird.f32 %v373
    %vm380 = vmor %vm378, %vm379
    %v381 = vsel %vm380, %v373, %v377
    %v382 = vand.u32 2147483647, %v340
    %vm383 = vcmp.eq.f32.partialorder %v382, 8.507059e+37
    %v384 = vand.u32 %v340, 2147483648
    %v385 = vor.u32 1.1754944e-38, %v384
    %v386 = vsel %vm383, %v385, %v381
    %v387 = vrcp.pop %v343
    %v388 = vmul.f32 %v343, %v387
    %v389 = vsub.f32 1.0, %v388
    %v390 = vmul.f32 %v387, %v389
    %v391 = vadd.f32 %v387, %v390
    %vm392 = vweird.f32 %v343
    %vm393 = vweird.f32 %v387
    %vm394 = vmor %vm392, %vm393
    %v395 = vsel %vm394, %v387, %v391
    %v396 = vand.u32 2147483647, %v343
    %vm397 = vcmp.eq.f32.partialorder %v396, 8.507059e+37
    %v398 = vand.u32 %v343, 2147483648
    %v399 = vor.u32 1.1754944e-38, %v398
    %v400 = vsel %vm397, %v399, %v395
    %v401 = vrcp.pop %v346
    %v402 = vmul.f32 %v346, %v401
    %v403 = vsub.f32 1.0, %v402
    %v404 = vmul.f32 %v401, %v403
    %v405 = vadd.f32 %v401, %v404
    %vm406 = vweird.f32 %v346
    %vm407 = vweird.f32 %v401
    %vm408 = vmor %vm406, %vm407
    %v409 = vsel %vm408, %v401, %v405
    %v410 = vand.u32 2147483647, %v346
    %vm411 = vcmp.eq.f32.partialorder %v410, 8.507059e+37
    %v412 = vand.u32 %v346, 2147483648
    %v413 = vor.u32 1.1754944e-38, %v412
    %v414 = vsel %vm411, %v413, %v409
    %v415 = vrcp.pop %v349
    %v416 = vmul.f32 %v349, %v415
    %v417 = vsub.f32 1.0, %v416
    %v418 = vmul.f32 %v415, %v417
    %v419 = vadd.f32 %v415, %v418
    %vm420 = vweird.f32 %v349
    %vm421 = vweird.f32 %v415
    %vm422 = vmor %vm420, %vm421
    %v423 = vsel %vm422, %v415, %v419
    %v424 = vand.u32 2147483647, %v349
    %vm425 = vcmp.eq.f32.partialorder %v424, 8.507059e+37
    %v426 = vand.u32 %v349, 2147483648
    %v427 = vor.u32 1.1754944e-38, %v426
    %v428 = vsel %vm425, %v427, %v423
    %v429 = vrcp.pop %v352
    %v430 = vmul.f32 %v352, %v429
    %v431 = vsub.f32 1.0, %v430
    %v432 = vmul.f32 %v429, %v431
    %v433 = vadd.f32 %v429, %v432
    %vm434 = vweird.f32 %v352
    %vm435 = vweird.f32 %v429
    %vm436 = vmor %vm434, %vm435
    %v437 = vsel %vm436, %v429, %v433
    %v438 = vand.u32 2147483647, %v352
    %vm439 = vcmp.eq.f32.partialorder %v438, 8.507059e+37
    %v440 = vand.u32 %v352, 2147483648
    %v441 = vor.u32 1.1754944e-38, %v440
    %v442 = vsel %vm439, %v441, %v437
    %v443 = vrcp.pop %v355
    %v444 = vmul.f32 %v355, %v443
    %v445 = vsub.f32 1.0, %v444
    %v446 = vmul.f32 %v443, %v445
    %v447 = vadd.f32 %v443, %v446
    %vm448 = vweird.f32 %v355
    %vm449 = vweird.f32 %v443
    %vm450 = vmor %vm448, %vm449
    %v451 = vsel %vm450, %v443, %v447
    %v452 = vand.u32 2147483647, %v355
    %vm453 = vcmp.eq.f32.partialorder %v452, 8.507059e+37
    %v454 = vand.u32 %v355, 2147483648
    %v455 = vor.u32 1.1754944e-38, %v454
    %v456 = vsel %vm453, %v455, %v451
    %v457 = vrcp.pop %v358
    %v458 = vmul.f32 %v358, %v457
    %v459 = vsub.f32 1.0, %v458
    %v460 = vmul.f32 %v457, %v459
    %v461 = vadd.f32 %v457, %v460
    %vm462 = vweird.f32 %v358
    %vm463 = vweird.f32 %v457
    %vm464 = vmor %vm462, %vm463
    %v465 = vsel %vm464, %v457, %v461
    %v466 = vand.u32 2147483647, %v358
    %vm467 = vcmp.eq.f32.partialorder %v466, 8.507059e+37
    %v468 = vand.u32 %v358, 2147483648
    %v469 = vor.u32 1.1754944e-38, %v468
    %v470 = vsel %vm467, %v469, %v465
    %v471 = vmul.f32 %v320, %v372
    %v472 = vmul.f32 %v322, %v386
    %v473 = vmul.f32 %v324, %v400
    %v474 = vmul.f32 %v326, %v414
    %v475 = vmul.f32 %v328, %v428
    %v476 = vmul.f32 %v330, %v442
    %v477 = vmul.f32 %v332, %v456
    %v478 = vmul.f32 %v334, %v470
    %v479 = vpack.c.bf16 %v472, %v471
    %v480 = vpack.c.bf16 %v474, %v473
    %v481 = vpack.c.bf16 %v476, %v475
    %v482 = vpack.c.bf16 %v478, %v477
    %483 = vrot.lane.b32.xlu0 %v190, 64
    %v484 = vpop.permute.xlu0 %483
    %v487 = vsel %vm286, %v479, 0
    %v490 = vsel %vm286, %v480, 0
    %v493 = vsel %vm286, %v481, 0
    %v496 = vsel %vm286, %v482, 0
    %498 = vmatpush.bf16.msra.mxu0 0
    %499 = vmatpush.bf16.msra.mxu0 0
    %500 = vmatpush.bf16.msra.mxu0 0
    %501 = vmatpush.bf16.msra.mxu0 0
    %502 = vmatpush.bf16.msra.mxu0 0
    %503 = vmatpush.bf16.msra.mxu0 0
    %504 = vmatpush.bf16.msra.mxu0 0
    %505 = vmatpush.bf16.msra.mxu0 %v484
    %506 = vmatmul.bf16.gmra.mxu0 %v487
    %v507 = vpop.f32.mrf.mxu0
    %v508 = vadd.f32 0.0, %v507
    %v509 = vpop.f32.mrf.mxu0
    %v510 = vadd.f32 0.0, %v509
    %511 = vmatmul.bf16.gmra.mxu0 %v490
    %v512 = vpop.f32.mrf.mxu0
    %v513 = vadd.f32 0.0, %v512
    %v514 = vpop.f32.mrf.mxu0
    %v515 = vadd.f32 0.0, %v514
    %516 = vmatmul.bf16.gmra.mxu0 %v493
    %v517 = vpop.f32.mrf.mxu0
    %v518 = vadd.f32 0.0, %v517
    %v519 = vpop.f32.mrf.mxu0
    %v520 = vadd.f32 0.0, %v519
    %521 = vmatmul.bf16.gmra.mxu0 %v496
    %v522 = vpop.f32.mrf.mxu0
    %v523 = vadd.f32 0.0, %v522
    %v524 = vpop.f32.mrf.mxu0
    %v525 = vadd.f32 0.0, %v524
    %526 = vdwg.mxu0
    %v527 = vsel %vm170, %v508, 0.0
    %v528 = vsel %vm171, %v510, 0.0
    %v529 = vsel %vm172, %v513, 0.0
    %v530 = vsel %vm173, %v515, 0.0
    %v531 = vsel %vm174, %v518, 0.0
    %v532 = vsel %vm175, %v520, 0.0
    %v533 = vsel %vm176, %v523, 0.0
    %v534 = vsel %vm177, %v525, 0.0
    %v535 = vadd.f32 %v527, %v529
    %v536 = vadd.f32 %v528, %v530
    %v537 = vadd.f32 %v535, %v531
    %v538 = vadd.f32 %v536, %v532
    %v539 = vadd.f32 %v537, %v533
    %v540 = vadd.f32 %v538, %v534
    %v541 = vpack.c.bf16 %v540, %v539
    %v542 = vld [vmem:[%s5] sm:$0xf]
    %v543 = vld [vmem:[%s5 + $0x4] sm:$0xf]
    %v544 = vld [vmem:[%s5 + $0x8] sm:$0xf]
    %v545 = vld [vmem:[%s5 + $0xc] sm:$0xf]
    %v546 = vld [vmem:[%s6] sm:$0x1]
    %v548 = vperm.slane %v546, 0
    %v554 = vunpack.c.l.b16 %v542
    %v555 = vunpack.c.l.b16 %v543
    %v556 = vunpack.c.l.b16 %v544
    %v557 = vunpack.c.l.b16 %v545
    %v558 = vpack.c.b16 %v555, %v554
    %v559 = vpack.c.b16 %v557, %v556
    %v563 = vsel %vm50, %v541, 0
    %565 = vmatpush.bf16.msra.mxu0 0
    %566 = vmatpush.bf16.msra.mxu0 0
    %567 = vmatpush.bf16.msra.mxu0 0
    %568 = vmatpush.bf16.msra.mxu0 0
    %569 = vmatpush.bf16.msra.mxu0 0
    %570 = vmatpush.bf16.msra.mxu0 0
    %571 = vmatpush.bf16.msra.mxu0 %v559
    %572 = vmatpush.bf16.msra.mxu0 %v558
    %573 = vmatmul.bf16.gmra.mxu0 %v563
    %v574 = vpop.f32.mrf.mxu0
    %v575 = vadd.f32 %v548, %v574
    %v576 = vpop.f32.mrf.mxu0
    %v577 = vadd.f32 %v548, %v576
    %578 = vdwg.mxu0
    %v579 = vadd.f32 %v46, %v575
    %v580 = vadd.f32 %v47, %v577
    %v581 = vld [vmem:[%s7] sm:$0x1]
    %v582 = vld [vmem:[%s8] sm:$0x1]
    %v583 = vsel %vm50, %v579, 0.0
    %584 = vadd.xlane.f32.xlu0 %v583
    %v585 = vpop.xlane.xlu0 %584
    %v586 = vsel %vm50, %v580, 0.0
    %587 = vadd.xlane.f32.xlu0 %v586
    %v588 = vpop.xlane.xlu0 %587
    %v589 = vmul.f32 %v585, %v63
    %v590 = vmul.f32 %v588, %v63
    %v591 = vsub.f32 %v579, %v589
    %v592 = vsub.f32 %v580, %v590
    %v593 = vmul.f32 %v591, %v591
    %v594 = vmul.f32 %v592, %v592
    %v595 = vsel %vm50, %v593, 0.0
    %596 = vadd.xlane.f32.xlu0 %v595
    %v597 = vpop.xlane.xlu0 %596
    %v598 = vsel %vm50, %v594, 0.0
    %599 = vadd.xlane.f32.xlu0 %v598
    %v600 = vpop.xlane.xlu0 %599
    %v601 = vmul.f32 %v597, %v63
    %v602 = vmul.f32 %v600, %v63
    %v603 = vadd.f32 %v601, 1e-05
    %v604 = vadd.f32 %v602, 1e-05
    %v605 = vrsqrt.pop %v603
    %v606 = vmul.f32 %v605, %v603
    %v607 = vmul.f32 %v606, %v605
    %v608 = vmul.f32 0.5, %v607
    %v609 = vsub.f32 1.5, %v608
    %v610 = vmul.f32 %v605, %v609
    %vm611 = vweird.f32 %v603
    %vm612 = vweird.f32 %v605
    %vm613 = vmor %vm611, %vm612
    %v614 = vsel %vm613, %v605, %v610
    %v615 = vrsqrt.pop %v604
    %v616 = vmul.f32 %v615, %v604
    %v617 = vmul.f32 %v616, %v615
    %v618 = vmul.f32 0.5, %v617
    %v619 = vsub.f32 1.5, %v618
    %v620 = vmul.f32 %v615, %v619
    %vm621 = vweird.f32 %v604
    %vm622 = vweird.f32 %v615
    %vm623 = vmor %vm621, %vm622
    %v624 = vsel %vm623, %v615, %v620
    %v625 = vmul.f32 %v591, %v614
    %v626 = vmul.f32 %v592, %v624
    %v628 = vperm.slane %v581, 0
    %v630 = vmul.f32 %v625, %v628
    %v631 = vmul.f32 %v626, %v628
    %v633 = vperm.slane %v582, 0
    %v635 = vadd.f32 %v630, %v633
    %v636 = vadd.f32 %v631, %v633
    %v637 = vpack.c.bf16 %v636, %v635
    %v638 = vld [vmem:[%s9] sm:$0xf]
    %v639 = vld [vmem:[%s9 + $0x4] sm:$0xf]
    %v640 = vld [vmem:[%s9 + $0x8] sm:$0xf]
    %v641 = vld [vmem:[%s9 + $0xc] sm:$0xf]
    %v642 = vld [vmem:[%s10] sm:$0x1]
    %v644 = vperm.slane %v642, 0
    %v650 = vunpack.c.l.b16 %v638
    %v651 = vunpack.c.l.b16 %v639
    %v652 = vunpack.c.l.b16 %v640
    %v653 = vunpack.c.l.b16 %v641
    %v654 = vpack.c.b16 %v651, %v650
    %v655 = vpack.c.b16 %v653, %v652
    %v659 = vsel %vm50, %v637, 0
    %661 = vmatpush.bf16.msra.mxu0 0
    %662 = vmatpush.bf16.msra.mxu0 0
    %663 = vmatpush.bf16.msra.mxu0 0
    %664 = vmatpush.bf16.msra.mxu0 0
    %665 = vmatpush.bf16.msra.mxu0 0
    %666 = vmatpush.bf16.msra.mxu0 0
    %667 = vmatpush.bf16.msra.mxu0 %v655
    %668 = vmatpush.bf16.msra.mxu0 %v654
    %669 = vmatmul.bf16.gmra.mxu0 %v659
    %v670 = vpop.f32.mrf.mxu0
    %v671 = vadd.f32 %v644, %v670
    %v672 = vpop.f32.mrf.mxu0
    %v673 = vadd.f32 %v644, %v672
    %674 = vdwg.mxu0
    %v675 = vmul.f32 %v671, 0.5
    %v676 = vmul.f32 %v673, 0.5
    %v677 = vmul.f32 %v671, 0.70710677
    %v678 = vmul.f32 %v673, 0.70710677
    %v679 = vmul.f32 %v677, %v677
    %v680 = vmin.f32 16.0, %v679
    %v681 = vmul.f32 %v680, 2.1237322e-06
    %v682 = vadd.f32 %v681, 0.00028619796
    %v683 = vmul.f32 %v680, %v682
    %v684 = vadd.f32 %v683, 0.0036580483
    %v685 = vmul.f32 %v680, %v684
    %v686 = vadd.f32 %v685, 0.05243302
    %v687 = vmul.f32 %v680, %v686
    %v688 = vadd.f32 %v687, 0.18741608
    %v689 = vmul.f32 %v680, %v688
    %v690 = vadd.f32 %v689, 1.1283791
    %v691 = vmul.f32 %v677, %v690
    %v692 = vmul.f32 %v680, 3.8918573e-05
    %v693 = vadd.f32 %v692, 0.001143296
    %v694 = vmul.f32 %v680, %v693
    %v695 = vadd.f32 %v694, 0.014752088
    %v696 = vmul.f32 %v680, %v695
    %v697 = vadd.f32 %v696, 0.112945676
    %v698 = vmul.f32 %v680, %v697
    %v699 = vadd.f32 %v698, 0.4994258
    %v700 = vmul.f32 %v680, %v699
    %v701 = vadd.f32 %v700, 1.0
    %v702 = vrcp.pop %v701
    %v703 = vmul.f32 %v701, %v702
    %v704 = vsub.f32 1.0, %v703
    %v705 = vmul.f32 %v702, %v704
    %v706 = vadd.f32 %v702, %v705
    %vm707 = vweird.f32 %v701
    %vm708 = vweird.f32 %v702
    %vm709 = vmor %vm707, %vm708
    %v710 = vsel %vm709, %v702, %v706
    %v711 = vand.u32 2147483647, %v701
    %vm712 = vcmp.eq.f32.partialorder %v711, 8.507059e+37
    %v713 = vand.u32 %v701, 2147483648
    %v714 = vor.u32 1.1754944e-38, %v713
    %v715 = vsel %vm712, %v714, %v710
    %v716 = vmul.f32 %v691, %v715
    %v717 = vmin.f32 %v716, 1.0
    %v718 = vmax.f32 %v717, -1.0
    %v719 = vmul.f32 %v678, %v678
    %v720 = vmin.f32 16.0, %v719
    %v721 = vmul.f32 %v720, 2.1237322e-06
    %v722 = vadd.f32 %v721, 0.00028619796
    %v723 = vmul.f32 %v720, %v722
    %v724 = vadd.f32 %v723, 0.0036580483
    %v725 = vmul.f32 %v720, %v724
    %v726 = vadd.f32 %v725, 0.05243302
    %v727 = vmul.f32 %v720, %v726
    %v728 = vadd.f32 %v727, 0.18741608
    %v729 = vmul.f32 %v720, %v728
    %v730 = vadd.f32 %v729, 1.1283791
    %v731 = vmul.f32 %v678, %v730
    %v732 = vmul.f32 %v720, 3.8918573e-05
    %v733 = vadd.f32 %v732, 0.001143296
    %v734 = vmul.f32 %v720, %v733
    %v735 = vadd.f32 %v734, 0.014752088
    %v736 = vmul.f32 %v720, %v735
    %v737 = vadd.f32 %v736, 0.112945676
    %v738 = vmul.f32 %v720, %v737
    %v739 = vadd.f32 %v738, 0.4994258
    %v740 = vmul.f32 %v720, %v739
    %v741 = vadd.f32 %v740, 1.0
    %v742 = vrcp.pop %v741
    %v743 = vmul.f32 %v741, %v742
    %v744 = vsub.f32 1.0, %v743
    %v745 = vmul.f32 %v742, %v744
    %v746 = vadd.f32 %v742, %v745
    %vm747 = vweird.f32 %v741
    %vm748 = vweird.f32 %v742
    %vm749 = vmor %vm747, %vm748
    %v750 = vsel %vm749, %v742, %v746
    %v751 = vand.u32 2147483647, %v741
    %vm752 = vcmp.eq.f32.partialorder %v751, 8.507059e+37
    %v753 = vand.u32 %v741, 2147483648
    %v754 = vor.u32 1.1754944e-38, %v753
    %v755 = vsel %vm752, %v754, %v750
    %v756 = vmul.f32 %v731, %v755
    %v757 = vmin.f32 %v756, 1.0
    %v758 = vmax.f32 %v757, -1.0
    %v759 = vadd.f32 %v718, 1.0
    %v760 = vadd.f32 %v758, 1.0
    %v761 = vmul.f32 %v675, %v759
    %v762 = vmul.f32 %v676, %v760
    %v763 = vpack.c.bf16 %v762, %v761
    %v764 = vld [vmem:[%s11] sm:$0xf]
    %v765 = vld [vmem:[%s11 + $0x4] sm:$0xf]
    %v766 = vld [vmem:[%s11 + $0x8] sm:$0xf]
    %v767 = vld [vmem:[%s11 + $0xc] sm:$0xf]
    %v768 = vld [vmem:[%s11 + $0x10] sm:$0xf]
    %v769 = vld [vmem:[%s11 + $0x14] sm:$0xf]
    %v770 = vld [vmem:[%s11 + $0x18] sm:$0xf]
    %v771 = vld [vmem:[%s11 + $0x1c] sm:$0xf]
    %v772 = vld [vmem:[%s11 + $0x20] sm:$0xf]
    %v773 = vld [vmem:[%s11 + $0x24] sm:$0xf]
    %v774 = vld [vmem:[%s11 + $0x28] sm:$0xf]
    %v775 = vld [vmem:[%s11 + $0x2c] sm:$0xf]
    %v776 = vld [vmem:[%s11 + $0x30] sm:$0xf]
    %v777 = vld [vmem:[%s11 + $0x34] sm:$0xf]
    %v778 = vld [vmem:[%s11 + $0x38] sm:$0xf]
    %v779 = vld [vmem:[%s11 + $0x3c] sm:$0xf]
    %v780 = vld [vmem:[%s12] sm:$0x1]
    %v782 = vperm.slane %v780, 0
    %v800 = vunpack.c.l.b16 %v764
    %v801 = vunpack.c.l.b16 %v765
    %v802 = vunpack.c.l.b16 %v766
    %v803 = vunpack.c.l.b16 %v767
    %v804 = vunpack.c.l.b16 %v768
    %v805 = vunpack.c.l.b16 %v769
    %v806 = vunpack.c.l.b16 %v770
    %v807 = vunpack.c.l.b16 %v771
    %v808 = vunpack.c.l.b16 %v772
    %v809 = vunpack.c.l.b16 %v773
    %v810 = vunpack.c.l.b16 %v774
    %v811 = vunpack.c.l.b16 %v775
    %v812 = vunpack.c.l.b16 %v776
    %v813 = vunpack.c.l.b16 %v777
    %v814 = vunpack.c.l.b16 %v778
    %v815 = vunpack.c.l.b16 %v779
    %v816 = vpack.c.b16 %v801, %v800
    %v817 = vpack.c.b16 %v803, %v802
    %v818 = vpack.c.b16 %v805, %v804
    %v819 = vpack.c.b16 %v807, %v806
    %v820 = vpack.c.b16 %v809, %v808
    %v821 = vpack.c.b16 %v811, %v810
    %v822 = vpack.c.b16 %v813, %v812
    %v823 = vpack.c.b16 %v815, %v814
    %832 = vmatpush.bf16.msra.mxu0 %v823
    %833 = vmatpush.bf16.msra.mxu0 %v822
    %834 = vmatpush.bf16.msra.mxu0 %v821
    %835 = vmatpush.bf16.msra.mxu0 %v820
    %836 = vmatpush.bf16.msra.mxu0 %v819
    %837 = vmatpush.bf16.msra.mxu0 %v818
    %838 = vmatpush.bf16.msra.mxu0 %v817
    %839 = vmatpush.bf16.msra.mxu0 %v816
    %840 = vmatmul.bf16.gmra.mxu0 %v763
    %v841 = vpop.f32.mrf.mxu0
    %v842 = vadd.f32 %v782, %v841
    %v843 = vpop.f32.mrf.mxu0
    %v844 = vadd.f32 %v782, %v843
    %845 = vdwg.mxu0
    %v846 = vadd.f32 %v579, %v842
    %v847 = vadd.f32 %v580, %v844
    %848 = vst.msk [vmem:[#allocation2] sm:$0xff] %vm50, %v846
    %849 = vst.msk [vmem:[#allocation2 + $0x8] sm:$0xff] %vm50, %v847
    // Predicated region
    $region54: #{tpu_custom_call.1} parent=1 // pred_check
      _
    $region55: #{tpu_custom_call.1} parent=1 // pred_check_branch
      %851 = sbr.rel (0) target = $region57
    $region56: #{tpu_custom_call.1} parent=1 // pred_region
      %853 = vsyncadd [#allocation3], 0
      %s854 = sshll.u32 [#allocation2], 4
      %s855 = int_to_ptr.vmem [resolvable:$true] %s854
      %s856 = sshll.u32 %s13, 4
      %s857 = int_to_ptr.hbm [resolvable:$true] %s856
      %862 = dma.vmem_to_hbm [thread:$0]  %s855, 256, %s857, [#allocation3], 128, 128, 8
    $region57: #{tpu_custom_call.1} parent=1 // pred_fallthru
      _
    // Predicated region
    $region58: #{tpu_custom_call.1} parent=1 // pred_check
      _
    $region59: #{tpu_custom_call.1} parent=1 // pred_check_branch
      %864 = sbr.rel (0) target = $region61
    $region60: #{tpu_custom_call.1} parent=1 // pred_region
      %866 = dma.done [#allocation3], 256
    $region61: #{tpu_custom_call.1} parent=1 // pred_fallthru
      _
    %867 = vsyncpa [#allocation3], 1

</llo_original>
